<compile_context>
chip_gen: v7x
topology: tpu7x:2x2x1
jax: 0.10.0
libtpu: 0.0.40
codegen_flags: <defaults>
</compile_context>

<pallas_src>
import functools

import numpy as np
import jax
import jax.numpy as jnp
from jax.experimental import pallas as pl
from jax.experimental.pallas import tpu as pltpu

EPS = 1e-5


# ----------------------------------------------------------------------------
# Kernel: whole problem in one invocation (tiny Othello-sized shapes).
# All activations are (C, M) with M = N*H*W on the lane axis.
# ----------------------------------------------------------------------------
def _block_kernel(shifts, inv_m, use_bf16,
                  x_ref, mask_ref,
                  w1_ref, g1_ref, be1_ref,
                  w2_ref, g2_ref, be2_ref,
                  w3_ref, g3_ref, be3_ref,
                  ws_ref, bs_ref,
                  o_ref):
    mm_dtype = jnp.bfloat16 if use_bf16 else jnp.float32

    def mm(a, b):
        # MXU matmul, always f32 accumulation.
        return jnp.dot(a.astype(mm_dtype), b.astype(mm_dtype),
                       preferred_element_type=jnp.float32)

    def bn(h, g, b):
        # Training-mode BatchNorm over the M axis per channel, one-pass stats
        # (var = E[x^2] - mean^2), all in f32.
        mean = jnp.sum(h, axis=1, keepdims=True) * inv_m
        ex2 = jnp.sum(h * h, axis=1, keepdims=True) * inv_m
        var = jnp.maximum(ex2 - mean * mean, 0.0)
        scale = g * jax.lax.rsqrt(var + EPS)
        return h * scale + (b - mean * scale)

    x = x_ref[...]                                           # (Cin, M) f32

    # conv1 (1x1) -> bn1 -> relu1   (conv bias cancelled by BN -> omitted)
    h1 = jnp.maximum(bn(mm(w1_ref[...], x), g1_ref[...], be1_ref[...]), 0.0)

    # conv2 (3x3, padding=1) -> bn2 -> relu2
    # im2col: nine lane-rolled copies of h1 stacked along sublanes, boundary
    # rows zeroed by the precomputed constant mask -> ONE K=9*C matmul.
    rolled = jnp.concatenate(
        [h1 if s == 0 else pltpu.roll(h1, s, axis=1) for s in shifts], axis=0)
    stacked = rolled * mask_ref[...]                         # (9*C, M)
    h2 = jnp.maximum(bn(mm(w2_ref[...], stacked), g2_ref[...], be2_ref[...]), 0.0)

    # conv3 (1x1) -> bn3   (conv bias cancelled by BN -> omitted)
    h3 = bn(mm(w3_ref[...], h2), g3_ref[...], be3_ref[...])

    # shortcut: 1x1 projection (identity shortcut is expressed by the wrapper
    # as identity weights + zero bias); its bias is real (no BN after it).
    sc = mm(ws_ref[...], x) + bs_ref[...]

    # relu3(h + shortcut) -> lane-dense (Cout, M) store (unmasked vst)
    o_ref[...] = jnp.maximum(h3 + sc, 0.0)


# ----------------------------------------------------------------------------
# Wrappers
# ----------------------------------------------------------------------------
def _prefer_bf16_matmul():
    """bf16 MXU operands pay off on v6e / v7x; keep f32 elsewhere (v5e has no
    bf16 VPU/EUP path and the f32 path has larger numerical margin)."""
    try:
        kind = jax.devices()[0].device_kind.lower()
    except Exception:
        return False
    return ("v6" in kind) or ("v7" in kind) or ("7x" in kind)


def _conv3x3_masks(N, H, W, C):
    """Compile-time 0/1 masks zeroing rows whose shifted (i, j) falls off the
    board (reproduces zero padding and suppresses batch-boundary wraparound).
    Expanded to (9*C, M) so they fold straight into the im2col stack."""
    M = N * H * W
    r = np.arange(M)
    i = (r // W) % H
    j = r % W
    masks = np.empty((9, M), np.float32)
    for k in range(9):
        di, dj = k // 3 - 1, k % 3 - 1
        masks[k] = ((i + di >= 0) & (i + di < H) &
                    (j + dj >= 0) & (j + dj < W)).astype(np.float32)
    return np.repeat(masks, C, axis=0)                       # (9*C, M)


def block_forward_cm(x_cm, p, N, H, W, use_bf16=None):
    """Channel-major entry point: x_cm is (Cin, M) with M = N*H*W flattened in
    (n, i, j) order; returns (Cout, M).  Chaining blocks in this layout avoids
    the NCHW glue transposes entirely."""
    if use_bf16 is None:
        use_bf16 = _prefer_bf16_matmul()
    Cin, M = x_cm.shape
    C = p["w2"].shape[1]
    Cout = p["w3"].shape[0]
    assert M == N * H * W

    masks = jnp.asarray(_conv3x3_masks(N, H, W, C))
    # (9, C, C) [k, out, in] -> (C, 9*C) matching the sublane-stacked im2col.
    w2s = jnp.transpose(p["w2"], (1, 0, 2)).reshape(C, 9 * C)
    # flat-row shift for tap k = ky*3 + kx  (di = ky - 1, dj = kx - 1)
    shifts = tuple((-(di * W + dj)) % M
                   for di in (-1, 0, 1) for dj in (-1, 0, 1))

    args = (x_cm.astype(jnp.float32), masks,
            p["w1"], p["g1"], p["be1"],
            w2s, p["g2"], p["be2"],
            p["w3"], p["g3"], p["be3"],
            p["ws"], p["bs"])

    def full_spec(a):
        nd = a.ndim
        return pl.BlockSpec(a.shape, lambda i, nd=nd: (0,) * nd)

    kernel = functools.partial(_block_kernel, shifts, 1.0 / M, use_bf16)
    out_cm = pl.pallas_call(
        kernel,
        out_shape=jax.ShapeDtypeStruct((Cout, M), jnp.float32),
        grid=(1,),
        in_specs=[full_spec(a) for a in args],
        out_specs=pl.BlockSpec((Cout, M), lambda i: (0, 0)),
        compiler_params=pltpu.CompilerParams(
            dimension_semantics=("arbitrary",)),
    )(*args)
    # Note: at much larger N*H*W / C, tile M with a "parallel" grid axis and a
    # two-pass BN (stats kernel + normalize kernel) so v7x's two TensorCores /
    # 64 MiB VMEM are used; at Othello sizes a single invocation is optimal.
    return out_cm


def block_forward(x_nchw, p, use_bf16=None):
    """NCHW wrapper matching the PyTorch module interface."""
    N, Cin, H, W = x_nchw.shape
    Cout = p["w3"].shape[0]
    M = N * H * W
    # Boundary glue only (one transpose each way); callers that keep
    # activations channel-major should call block_forward_cm directly.
    x_cm = jnp.transpose(x_nchw, (1, 0, 2, 3)).reshape(Cin, M)
    out_cm = block_forward_cm(x_cm, p, N, H, W, use_bf16=use_bf16)
    return jnp.transpose(out_cm.reshape(Cout, N, H, W), (1, 0, 2, 3))


# ----------------------------------------------------------------------------
# Deterministic parameter construction (kernel layout: 1x1 weights are
# (Cout, Cin), w2 is (9, Cout, Cin) with k = ky*3 + kx, per-channel vectors
# are (C, 1)).  Conv biases b1/b2/b3 exist (PyTorch semantics) but are only
# used by the reference -- BN cancels them, so the kernel skips them.
# ----------------------------------------------------------------------------
def make_params(key, cin, cout):
    c = cout
    ks = jax.random.split(key, 16)

    def rnd(k, shape, scale=0.2):
        return scale * jax.random.normal(k, shape, jnp.float32)

    if cin != cout:
        ws = rnd(ks[12], (cout, cin))
        bs = rnd(ks[13], (cout, 1), 0.05)
    else:
        ws = jnp.eye(cout, cin, dtype=jnp.float32)           # identity shortcut
        bs = jnp.zeros((cout, 1), jnp.float32)

    return dict(
        w1=rnd(ks[0], (c, cin)),    b1=rnd(ks[1], (c, 1), 0.05),
        g1=1.0 + rnd(ks[2], (c, 1), 0.05), be1=rnd(ks[3], (c, 1), 0.05),
        w2=rnd(ks[4], (9, c, c)),   b2=rnd(ks[5], (c, 1), 0.05),
        g2=1.0 + rnd(ks[6], (c, 1), 0.05), be2=rnd(ks[7], (c, 1), 0.05),
        w3=rnd(ks[8], (cout, c)),   b3=rnd(ks[9], (cout, 1), 0.05),
        g3=1.0 + rnd(ks[10], (cout, 1), 0.05), be3=rnd(ks[11], (cout, 1), 0.05),
        ws=ws, bs=bs,
    )


# ----------------------------------------------------------------------------
# Pure-JAX reference (mirrors PyTorch NCHW semantics, biases included)
# ----------------------------------------------------------------------------
def _to_oihw_1x1(w_oi):                 # (Cout, Cin) -> (Cout, Cin, 1, 1)
    return w_oi[:, :, None, None]


def _to_oihw_3x3(w):                    # (9, Cout, Cin), k=ky*3+kx -> (Cout, Cin, 3, 3)
    co, ci = w.shape[1], w.shape[2]
    return jnp.transpose(w.reshape(3, 3, co, ci), (2, 3, 0, 1))


def _conv(x, w_oihw, b, pad):
    y = jax.lax.conv_general_dilated(
        x, w_oihw, window_strides=(1, 1),
        padding=[(pad, pad), (pad, pad)],
        dimension_numbers=("NCHW", "OIHW", "NCHW"))
    return y + b.reshape(1, -1, 1, 1)


def _bn(x, g, b):
    mean = jnp.mean(x, axis=(0, 2, 3), keepdims=True)
    var = jnp.mean((x - mean) ** 2, axis=(0, 2, 3), keepdims=True)
    return ((x - mean) * jax.lax.rsqrt(var + EPS) * g.reshape(1, -1, 1, 1)
            + b.reshape(1, -1, 1, 1))


def reference_forward(x, p):
    # Conv biases ARE applied here; the Pallas kernel omits them because
    # training-mode BN cancels a per-channel constant exactly.
    h = jnp.maximum(_bn(_conv(x, _to_oihw_1x1(p["w1"]), p["b1"], 0), p["g1"], p["be1"]), 0.0)
    h = jnp.maximum(_bn(_conv(h, _to_oihw_3x3(p["w2"]), p["b2"], 1), p["g2"], p["be2"]), 0.0)
    h = _bn(_conv(h, _to_oihw_1x1(p["w3"]), p["b3"], 0), p["g3"], p["be3"])
    sc = _conv(x, _to_oihw_1x1(p["ws"]), p["bs"], 0)
    return jnp.maximum(h + sc, 0.0)


if __name__ == "__main__":
    key = jax.random.PRNGKey(0)
    kx, kp = jax.random.split(key)

    # Othello-board-like shapes: batch=2, channel_in=4, channel_out=8, 8x8 board
    # -> M = N*H*W = 128 = exactly one lane-dense vreg row per channel.
    N, Cin, Cout, H, W = 2, 4, 8, 8, 8
    x = jax.random.normal(kx, (N, Cin, H, W), jnp.float32)
    params = make_params(kp, Cin, Cout)

    use_bf16 = _prefer_bf16_matmul()
    y = jax.block_until_ready(block_forward(x, params, use_bf16=use_bf16))
    y_ref = jax.block_until_ready(reference_forward(x, params))

    assert y.shape == (N, Cout, H, W)
    # bf16 MXU operands (v6e/v7x) -> looser numerical check; f32 path stays tight.
    tol = 5e-2 if use_bf16 else 2e-3
    np.testing.assert_allclose(np.asarray(y), np.asarray(y_ref), atol=tol, rtol=tol)
    print("KERNEL_OK")
</pallas_src>

<mosaic_0001>
module attributes {stable_mosaic.version = 11 : i64} {
  func.func @_block_kernel(%arg0: i32, %arg1: memref<4x128xf32, #tpu.memory_space<vmem>>, %arg2: memref<72x128xf32, #tpu.memory_space<vmem>>, %arg3: memref<8x4xf32, #tpu.memory_space<vmem>>, %arg4: memref<8x1xf32, #tpu.memory_space<vmem>>, %arg5: memref<8x1xf32, #tpu.memory_space<vmem>>, %arg6: memref<8x72xf32, #tpu.memory_space<vmem>>, %arg7: memref<8x1xf32, #tpu.memory_space<vmem>>, %arg8: memref<8x1xf32, #tpu.memory_space<vmem>>, %arg9: memref<8x8xf32, #tpu.memory_space<vmem>>, %arg10: memref<8x1xf32, #tpu.memory_space<vmem>>, %arg11: memref<8x1xf32, #tpu.memory_space<vmem>>, %arg12: memref<8x4xf32, #tpu.memory_space<vmem>>, %arg13: memref<8x1xf32, #tpu.memory_space<vmem>>, %arg14: memref<8x128xf32, #tpu.memory_space<vmem>>) attributes {dimension_semantics = [#tpu.dimension_semantics<arbitrary>], iteration_bounds = array<i64: 1>, scalar_prefetch = 0 : i64, scratch_operands = 0 : i64, tpu.core_type = #tpu.core_type<tc>, window_params = [{pipeline_mode = #tpu.pipeline_mode<synchronous>, transform_indices = @transform_0, window_bounds = array<i64: 4, 128>}, {pipeline_mode = #tpu.pipeline_mode<synchronous>, transform_indices = @transform_1, window_bounds = array<i64: 72, 128>}, {pipeline_mode = #tpu.pipeline_mode<synchronous>, transform_indices = @transform_2, window_bounds = array<i64: 8, 4>}, {pipeline_mode = #tpu.pipeline_mode<synchronous>, transform_indices = @transform_3, window_bounds = array<i64: 8, 1>}, {pipeline_mode = #tpu.pipeline_mode<synchronous>, transform_indices = @transform_4, window_bounds = array<i64: 8, 1>}, {pipeline_mode = #tpu.pipeline_mode<synchronous>, transform_indices = @transform_5, window_bounds = array<i64: 8, 72>}, {pipeline_mode = #tpu.pipeline_mode<synchronous>, transform_indices = @transform_6, window_bounds = array<i64: 8, 1>}, {pipeline_mode = #tpu.pipeline_mode<synchronous>, transform_indices = @transform_7, window_bounds = array<i64: 8, 1>}, {pipeline_mode = #tpu.pipeline_mode<synchronous>, transform_indices = @transform_8, window_bounds = array<i64: 8, 8>}, {pipeline_mode = #tpu.pipeline_mode<synchronous>, transform_indices = @transform_9, window_bounds = array<i64: 8, 1>}, {pipeline_mode = #tpu.pipeline_mode<synchronous>, transform_indices = @transform_10, window_bounds = array<i64: 8, 1>}, {pipeline_mode = #tpu.pipeline_mode<synchronous>, transform_indices = @transform_11, window_bounds = array<i64: 8, 4>}, {pipeline_mode = #tpu.pipeline_mode<synchronous>, transform_indices = @transform_12, window_bounds = array<i64: 8, 1>}, {pipeline_mode = #tpu.pipeline_mode<synchronous>, transform_indices = @transform_13, window_bounds = array<i64: 8, 128>}]} {
    %c0 = arith.constant 0 : index
    %c0_0 = arith.constant 0 : index
    %0 = vector.load %arg1[%c0, %c0_0] : memref<4x128xf32, #tpu.memory_space<vmem>>, vector<4x128xf32>
    %c0_1 = arith.constant 0 : index
    %c0_2 = arith.constant 0 : index
    %1 = vector.load %arg3[%c0_1, %c0_2] : memref<8x4xf32, #tpu.memory_space<vmem>>, vector<8x4xf32>
    %cst = arith.constant dense<0.000000e+00> : vector<8x128xf32>
    %2 = tpu.matmul %1, %0, %cst {dimension_numbers = #tpu.dot_dimension_numbers<[1], [0], [0], [1], [0, 0, 1, 1], [], []>} : vector<8x4xf32>, vector<4x128xf32>, vector<8x128xf32> -> vector<8x128xf32>
    %c0_3 = arith.constant 0 : index
    %c0_4 = arith.constant 0 : index
    %3 = vector.load %arg4[%c0_3, %c0_4] : memref<8x1xf32, #tpu.memory_space<vmem>>, vector<8x1xf32>
    %c0_5 = arith.constant 0 : index
    %c0_6 = arith.constant 0 : index
    %4 = vector.load %arg5[%c0_5, %c0_6] : memref<8x1xf32, #tpu.memory_space<vmem>>, vector<8x1xf32>
    %cst_7 = arith.constant dense<0.000000e+00> : vector<8xf32>
    %5 = vector.multi_reduction <add>, %2, %cst_7 [1] : vector<8x128xf32> to vector<8xf32>
    %6 = vector.shape_cast %5 : vector<8xf32> to vector<8x1xf32>
    %cst_8 = arith.constant 7.812500e-03 : f32
    %7 = vector.broadcast %cst_8 : f32 to vector<8x1xf32>
    %8 = arith.mulf %6, %7 : vector<8x1xf32>
    %9 = arith.mulf %2, %2 : vector<8x128xf32>
    %cst_9 = arith.constant dense<0.000000e+00> : vector<8xf32>
    %10 = vector.multi_reduction <add>, %9, %cst_9 [1] : vector<8x128xf32> to vector<8xf32>
    %11 = vector.shape_cast %10 : vector<8xf32> to vector<8x1xf32>
    %cst_10 = arith.constant 7.812500e-03 : f32
    %12 = vector.broadcast %cst_10 : f32 to vector<8x1xf32>
    %13 = arith.mulf %11, %12 : vector<8x1xf32>
    %14 = arith.mulf %8, %8 : vector<8x1xf32>
    %15 = arith.subf %13, %14 : vector<8x1xf32>
    %cst_11 = arith.constant 0.000000e+00 : f32
    %16 = vector.broadcast %cst_11 : f32 to vector<8x1xf32>
    %17 = arith.maximumf %15, %16 : vector<8x1xf32>
    %cst_12 = arith.constant 9.99999974E-6 : f32
    %18 = vector.broadcast %cst_12 : f32 to vector<8x1xf32>
    %19 = arith.addf %17, %18 : vector<8x1xf32>
    %20 = math.rsqrt %19 : vector<8x1xf32>
    %21 = arith.mulf %3, %20 : vector<8x1xf32>
    %22 = vector.broadcast %21 : vector<8x1xf32> to vector<8x128xf32>
    %23 = arith.mulf %2, %22 : vector<8x128xf32>
    %24 = arith.mulf %8, %21 : vector<8x1xf32>
    %25 = arith.subf %4, %24 : vector<8x1xf32>
    %26 = vector.broadcast %25 : vector<8x1xf32> to vector<8x128xf32>
    %27 = arith.addf %23, %26 : vector<8x128xf32>
    %cst_13 = arith.constant 0.000000e+00 : f32
    %28 = vector.broadcast %cst_13 : f32 to vector<8x128xf32>
    %29 = arith.maximumf %27, %28 : vector<8x128xf32>
    %c9_i32 = arith.constant 9 : i32
    %30 = tpu.dynamic_rotate %29 by %c9_i32 dim 1 : vector<8x128xf32>, i32 -> vector<8x128xf32>
    %c8_i32 = arith.constant 8 : i32
    %31 = tpu.dynamic_rotate %29 by %c8_i32 dim 1 : vector<8x128xf32>, i32 -> vector<8x128xf32>
    %c7_i32 = arith.constant 7 : i32
    %32 = tpu.dynamic_rotate %29 by %c7_i32 dim 1 : vector<8x128xf32>, i32 -> vector<8x128xf32>
    %c1_i32 = arith.constant 1 : i32
    %33 = tpu.dynamic_rotate %29 by %c1_i32 dim 1 : vector<8x128xf32>, i32 -> vector<8x128xf32>
    %c127_i32 = arith.constant 127 : i32
    %34 = tpu.dynamic_rotate %29 by %c127_i32 dim 1 : vector<8x128xf32>, i32 -> vector<8x128xf32>
    %c121_i32 = arith.constant 121 : i32
    %35 = tpu.dynamic_rotate %29 by %c121_i32 dim 1 : vector<8x128xf32>, i32 -> vector<8x128xf32>
    %c120_i32 = arith.constant 120 : i32
    %36 = tpu.dynamic_rotate %29 by %c120_i32 dim 1 : vector<8x128xf32>, i32 -> vector<8x128xf32>
    %c119_i32 = arith.constant 119 : i32
    %37 = tpu.dynamic_rotate %29 by %c119_i32 dim 1 : vector<8x128xf32>, i32 -> vector<8x128xf32>
    %38 = tpu.concatenate %30, %31, %32, %33, %29, %34, %35, %36, %37 in 0 : vector<8x128xf32>, vector<8x128xf32>, vector<8x128xf32>, vector<8x128xf32>, vector<8x128xf32>, vector<8x128xf32>, vector<8x128xf32>, vector<8x128xf32>, vector<8x128xf32> -> vector<72x128xf32>
    %c0_14 = arith.constant 0 : index
    %c0_15 = arith.constant 0 : index
    %39 = vector.load %arg2[%c0_14, %c0_15] : memref<72x128xf32, #tpu.memory_space<vmem>>, vector<72x128xf32>
    %40 = arith.mulf %38, %39 : vector<72x128xf32>
    %c0_16 = arith.constant 0 : index
    %c0_17 = arith.constant 0 : index
    %41 = vector.load %arg6[%c0_16, %c0_17] : memref<8x72xf32, #tpu.memory_space<vmem>>, vector<8x72xf32>
    %cst_18 = arith.constant dense<0.000000e+00> : vector<8x128xf32>
    %42 = tpu.matmul %41, %40, %cst_18 {dimension_numbers = #tpu.dot_dimension_numbers<[1], [0], [0], [1], [0, 0, 1, 1], [], []>} : vector<8x72xf32>, vector<72x128xf32>, vector<8x128xf32> -> vector<8x128xf32>
    %c0_19 = arith.constant 0 : index
    %c0_20 = arith.constant 0 : index
    %43 = vector.load %arg7[%c0_19, %c0_20] : memref<8x1xf32, #tpu.memory_space<vmem>>, vector<8x1xf32>
    %c0_21 = arith.constant 0 : index
    %c0_22 = arith.constant 0 : index
    %44 = vector.load %arg8[%c0_21, %c0_22] : memref<8x1xf32, #tpu.memory_space<vmem>>, vector<8x1xf32>
    %cst_23 = arith.constant dense<0.000000e+00> : vector<8xf32>
    %45 = vector.multi_reduction <add>, %42, %cst_23 [1] : vector<8x128xf32> to vector<8xf32>
    %46 = vector.shape_cast %45 : vector<8xf32> to vector<8x1xf32>
    %cst_24 = arith.constant 7.812500e-03 : f32
    %47 = vector.broadcast %cst_24 : f32 to vector<8x1xf32>
    %48 = arith.mulf %46, %47 : vector<8x1xf32>
    %49 = arith.mulf %42, %42 : vector<8x128xf32>
    %cst_25 = arith.constant dense<0.000000e+00> : vector<8xf32>
    %50 = vector.multi_reduction <add>, %49, %cst_25 [1] : vector<8x128xf32> to vector<8xf32>
    %51 = vector.shape_cast %50 : vector<8xf32> to vector<8x1xf32>
    %cst_26 = arith.constant 7.812500e-03 : f32
    %52 = vector.broadcast %cst_26 : f32 to vector<8x1xf32>
    %53 = arith.mulf %51, %52 : vector<8x1xf32>
    %54 = arith.mulf %48, %48 : vector<8x1xf32>
    %55 = arith.subf %53, %54 : vector<8x1xf32>
    %cst_27 = arith.constant 0.000000e+00 : f32
    %56 = vector.broadcast %cst_27 : f32 to vector<8x1xf32>
    %57 = arith.maximumf %55, %56 : vector<8x1xf32>
    %cst_28 = arith.constant 9.99999974E-6 : f32
    %58 = vector.broadcast %cst_28 : f32 to vector<8x1xf32>
    %59 = arith.addf %57, %58 : vector<8x1xf32>
    %60 = math.rsqrt %59 : vector<8x1xf32>
    %61 = arith.mulf %43, %60 : vector<8x1xf32>
    %62 = vector.broadcast %61 : vector<8x1xf32> to vector<8x128xf32>
    %63 = arith.mulf %42, %62 : vector<8x128xf32>
    %64 = arith.mulf %48, %61 : vector<8x1xf32>
    %65 = arith.subf %44, %64 : vector<8x1xf32>
    %66 = vector.broadcast %65 : vector<8x1xf32> to vector<8x128xf32>
    %67 = arith.addf %63, %66 : vector<8x128xf32>
    %cst_29 = arith.constant 0.000000e+00 : f32
    %68 = vector.broadcast %cst_29 : f32 to vector<8x128xf32>
    %69 = arith.maximumf %67, %68 : vector<8x128xf32>
    %c0_30 = arith.constant 0 : index
    %c0_31 = arith.constant 0 : index
    %70 = vector.load %arg9[%c0_30, %c0_31] : memref<8x8xf32, #tpu.memory_space<vmem>>, vector<8x8xf32>
    %cst_32 = arith.constant dense<0.000000e+00> : vector<8x128xf32>
    %71 = tpu.matmul %70, %69, %cst_32 {dimension_numbers = #tpu.dot_dimension_numbers<[1], [0], [0], [1], [0, 0, 1, 1], [], []>} : vector<8x8xf32>, vector<8x128xf32>, vector<8x128xf32> -> vector<8x128xf32>
    %c0_33 = arith.constant 0 : index
    %c0_34 = arith.constant 0 : index
    %72 = vector.load %arg10[%c0_33, %c0_34] : memref<8x1xf32, #tpu.memory_space<vmem>>, vector<8x1xf32>
    %c0_35 = arith.constant 0 : index
    %c0_36 = arith.constant 0 : index
    %73 = vector.load %arg11[%c0_35, %c0_36] : memref<8x1xf32, #tpu.memory_space<vmem>>, vector<8x1xf32>
    %cst_37 = arith.constant dense<0.000000e+00> : vector<8xf32>
    %74 = vector.multi_reduction <add>, %71, %cst_37 [1] : vector<8x128xf32> to vector<8xf32>
    %75 = vector.shape_cast %74 : vector<8xf32> to vector<8x1xf32>
    %cst_38 = arith.constant 7.812500e-03 : f32
    %76 = vector.broadcast %cst_38 : f32 to vector<8x1xf32>
    %77 = arith.mulf %75, %76 : vector<8x1xf32>
    %78 = arith.mulf %71, %71 : vector<8x128xf32>
    %cst_39 = arith.constant dense<0.000000e+00> : vector<8xf32>
    %79 = vector.multi_reduction <add>, %78, %cst_39 [1] : vector<8x128xf32> to vector<8xf32>
    %80 = vector.shape_cast %79 : vector<8xf32> to vector<8x1xf32>
    %cst_40 = arith.constant 7.812500e-03 : f32
    %81 = vector.broadcast %cst_40 : f32 to vector<8x1xf32>
    %82 = arith.mulf %80, %81 : vector<8x1xf32>
    %83 = arith.mulf %77, %77 : vector<8x1xf32>
    %84 = arith.subf %82, %83 : vector<8x1xf32>
    %cst_41 = arith.constant 0.000000e+00 : f32
    %85 = vector.broadcast %cst_41 : f32 to vector<8x1xf32>
    %86 = arith.maximumf %84, %85 : vector<8x1xf32>
    %cst_42 = arith.constant 9.99999974E-6 : f32
    %87 = vector.broadcast %cst_42 : f32 to vector<8x1xf32>
    %88 = arith.addf %86, %87 : vector<8x1xf32>
    %89 = math.rsqrt %88 : vector<8x1xf32>
    %90 = arith.mulf %72, %89 : vector<8x1xf32>
    %91 = vector.broadcast %90 : vector<8x1xf32> to vector<8x128xf32>
    %92 = arith.mulf %71, %91 : vector<8x128xf32>
    %93 = arith.mulf %77, %90 : vector<8x1xf32>
    %94 = arith.subf %73, %93 : vector<8x1xf32>
    %95 = vector.broadcast %94 : vector<8x1xf32> to vector<8x128xf32>
    %96 = arith.addf %92, %95 : vector<8x128xf32>
    %c0_43 = arith.constant 0 : index
    %c0_44 = arith.constant 0 : index
    %97 = vector.load %arg12[%c0_43, %c0_44] : memref<8x4xf32, #tpu.memory_space<vmem>>, vector<8x4xf32>
    %cst_45 = arith.constant dense<0.000000e+00> : vector<8x128xf32>
    %98 = tpu.matmul %97, %0, %cst_45 {dimension_numbers = #tpu.dot_dimension_numbers<[1], [0], [0], [1], [0, 0, 1, 1], [], []>} : vector<8x4xf32>, vector<4x128xf32>, vector<8x128xf32> -> vector<8x128xf32>
    %c0_46 = arith.constant 0 : index
    %c0_47 = arith.constant 0 : index
    %99 = vector.load %arg13[%c0_46, %c0_47] : memref<8x1xf32, #tpu.memory_space<vmem>>, vector<8x1xf32>
    %100 = vector.broadcast %99 : vector<8x1xf32> to vector<8x128xf32>
    %101 = arith.addf %98, %100 : vector<8x128xf32>
    %102 = arith.addf %96, %101 : vector<8x128xf32>
    %cst_48 = arith.constant 0.000000e+00 : f32
    %103 = vector.broadcast %cst_48 : f32 to vector<8x128xf32>
    %104 = arith.maximumf %102, %103 : vector<8x128xf32>
    %c0_49 = arith.constant 0 : index
    %c0_50 = arith.constant 0 : index
    %105 = vector.load %arg14[%c0_49, %c0_50] : memref<8x128xf32, #tpu.memory_space<vmem>>, vector<8x128xf32>
    tpu.vector_store %arg14[%c0_49, %c0_50], %104 {strides = array<i32>} : memref<8x128xf32, #tpu.memory_space<vmem>>, vector<8x128xf32>,
    return
  }
  func.func @transform_0(%arg0: i32) -> (i32, i32) {
    %c0_i32 = arith.constant 0 : i32
    %c0_i32_0 = arith.constant 0 : i32
    %c0_i32_1 = arith.constant 0 : i32
    return %c0_i32, %c0_i32_0 : i32, i32
  }
  func.func @transform_1(%arg0: i32) -> (i32, i32) {
    %c0_i32 = arith.constant 0 : i32
    %c0_i32_0 = arith.constant 0 : i32
    %c0_i32_1 = arith.constant 0 : i32
    return %c0_i32, %c0_i32_0 : i32, i32
  }
  func.func @transform_2(%arg0: i32) -> (i32, i32) {
    %c0_i32 = arith.constant 0 : i32
    %c0_i32_0 = arith.constant 0 : i32
    %c0_i32_1 = arith.constant 0 : i32
    return %c0_i32, %c0_i32_0 : i32, i32
  }
  func.func @transform_3(%arg0: i32) -> (i32, i32) {
    %c0_i32 = arith.constant 0 : i32
    %c0_i32_0 = arith.constant 0 : i32
    %c0_i32_1 = arith.constant 0 : i32
    return %c0_i32, %c0_i32_0 : i32, i32
  }
  func.func @transform_4(%arg0: i32) -> (i32, i32) {
    %c0_i32 = arith.constant 0 : i32
    %c0_i32_0 = arith.constant 0 : i32
    %c0_i32_1 = arith.constant 0 : i32
    return %c0_i32, %c0_i32_0 : i32, i32
  }
  func.func @transform_5(%arg0: i32) -> (i32, i32) {
    %c0_i32 = arith.constant 0 : i32
    %c0_i32_0 = arith.constant 0 : i32
    %c0_i32_1 = arith.constant 0 : i32
    return %c0_i32, %c0_i32_0 : i32, i32
  }
  func.func @transform_6(%arg0: i32) -> (i32, i32) {
    %c0_i32 = arith.constant 0 : i32
    %c0_i32_0 = arith.constant 0 : i32
    %c0_i32_1 = arith.constant 0 : i32
    return %c0_i32, %c0_i32_0 : i32, i32
  }
  func.func @transform_7(%arg0: i32) -> (i32, i32) {
    %c0_i32 = arith.constant 0 : i32
    %c0_i32_0 = arith.constant 0 : i32
    %c0_i32_1 = arith.constant 0 : i32
    return %c0_i32, %c0_i32_0 : i32, i32
  }
  func.func @transform_8(%arg0: i32) -> (i32, i32) {
    %c0_i32 = arith.constant 0 : i32
    %c0_i32_0 = arith.constant 0 : i32
    %c0_i32_1 = arith.constant 0 : i32
    return %c0_i32, %c0_i32_0 : i32, i32
  }
  func.func @transform_9(%arg0: i32) -> (i32, i32) {
    %c0_i32 = arith.constant 0 : i32
    %c0_i32_0 = arith.constant 0 : i32
    %c0_i32_1 = arith.constant 0 : i32
    return %c0_i32, %c0_i32_0 : i32, i32
  }
  func.func @transform_10(%arg0: i32) -> (i32, i32) {
    %c0_i32 = arith.constant 0 : i32
    %c0_i32_0 = arith.constant 0 : i32
    %c0_i32_1 = arith.constant 0 : i32
    return %c0_i32, %c0_i32_0 : i32, i32
  }
  func.func @transform_11(%arg0: i32) -> (i32, i32) {
    %c0_i32 = arith.constant 0 : i32
    %c0_i32_0 = arith.constant 0 : i32
    %c0_i32_1 = arith.constant 0 : i32
    return %c0_i32, %c0_i32_0 : i32, i32
  }
  func.func @transform_12(%arg0: i32) -> (i32, i32) {
    %c0_i32 = arith.constant 0 : i32
    %c0_i32_0 = arith.constant 0 : i32
    %c0_i32_1 = arith.constant 0 : i32
    return %c0_i32, %c0_i32_0 : i32, i32
  }
  func.func @transform_13(%arg0: i32) -> (i32, i32) {
    %c0_i32 = arith.constant 0 : i32
    %c0_i32_0 = arith.constant 0 : i32
    %c0_i32_1 = arith.constant 0 : i32
    return %c0_i32, %c0_i32_0 : i32, i32
  }
}

</mosaic_0001>

<llo_original>
// kernel: tpu_custom_call.1
$region0: #{tpu_custom_call.1}
  #allocation0 [shape = 'u32[]', space=smem, size = 0x4, offset = 0x4, fixed_abs, tag = 'smem constant byte address 0x4 - core index']
  #allocation1 [shape = 'u32[144,128]{1,0:T(1,128)}', space=vmem, size = 0x12000, scoped, tag = 'internal scratch']
  %s0 = inlined_call_operand.hbm [shape: f32[4,128], index: 0, kind: input, shape index: {}]
  %s1 = inlined_call_operand.vmem [shape: f32[72,128], index: 1, kind: input, shape index: {}]
  %s2 = inlined_call_operand.vmem [shape: f32[8,4], index: 2, kind: input, shape index: {}]
  %s3 = inlined_call_operand.vmem [shape: f32[8,1], index: 3, kind: input, shape index: {}]
  %s4 = inlined_call_operand.vmem [shape: f32[8,1], index: 4, kind: input, shape index: {}]
  %s5 = inlined_call_operand.vmem [shape: f32[8,72], index: 5, kind: input, shape index: {}]
  %s6 = inlined_call_operand.vmem [shape: f32[8,1], index: 6, kind: input, shape index: {}]
  %s7 = inlined_call_operand.vmem [shape: f32[8,1], index: 7, kind: input, shape index: {}]
  %s8 = inlined_call_operand.vmem [shape: f32[8,8], index: 8, kind: input, shape index: {}]
  %s9 = inlined_call_operand.vmem [shape: f32[8,1], index: 9, kind: input, shape index: {}]
  %s10 = inlined_call_operand.vmem [shape: f32[8,1], index: 10, kind: input, shape index: {}]
  %s11 = inlined_call_operand.vmem [shape: f32[8,4], index: 11, kind: input, shape index: {}]
  %s12 = inlined_call_operand.vmem [shape: f32[8,1], index: 12, kind: input, shape index: {}]
  %s13 = inlined_call_operand.hbm [shape: f32[8,128], index: 13, kind: output, shape index: {}]
  %s14 = sld [smem:[#allocation0]]
  $region66: #{tpu_custom_call.1} parent=0
    _
  %s16 = ssub.s32 1, %s14
  %s17 = scalar_select 0, %s16, %s14
  $region1: #{tpu_custom_call.1} parent=0
    #allocation2 [shape = 'u8[2048]{0}', space=vmem, size = 0x800, scoped, tag = 'input window, operand 0, single buffered']
    #allocation3 [shape = 's32[1]{0}', space=sflag, size = 0x4, scoped, tag = 'scoped memory for tpu_custom_call.1']
    #allocation4 [shape = 's32[1]{0}', space=sflag, size = 0x4, scoped, tag = 'scoped memory for tpu_custom_call.1']
    #allocation5 [shape = 'u8[4096]{0}', space=vmem, size = 0x1000, scoped, tag = 'output window, operand 0, single buffered']
    %18 = vsyncpa [#allocation3], 0
    %19 = vsyncpa [#allocation4], 0
    // Predicated region
    $region2: #{tpu_custom_call.1} parent=1 // pred_check
      _
    $region3: #{tpu_custom_call.1} parent=1 // pred_check_branch
      %21 = sbr.rel (0) target = $region5
    $region4: #{tpu_custom_call.1} parent=1 // pred_region
      %s23 = ssub.s32 64, 64
      %24 = vsyncadd [#allocation3], %s23
      %s26 = sshll.u32 [#allocation2], 4
      %s27 = int_to_ptr.vmem [resolvable:$true] %s26
      %29 = dma.hbm_to_vmem [thread:$0]  %s0, 64, %s27, [#allocation3]
    $region5: #{tpu_custom_call.1} parent=1 // pred_fallthru
      _
    // Predicated region
    $region6: #{tpu_custom_call.1} parent=1 // pred_check
      _
    $region7: #{tpu_custom_call.1} parent=1 // pred_check_branch
      %31 = sbr.rel (0) target = $region9
    $region8: #{tpu_custom_call.1} parent=1 // pred_region
      _
    $region9: #{tpu_custom_call.1} parent=1 // pred_fallthru
      _
    // Predicated region
    $region10: #{tpu_custom_call.1} parent=1 // pred_check
      _
    $region11: #{tpu_custom_call.1} parent=1 // pred_check_branch
      %33 = sbr.rel (0) target = $region13
    $region12: #{tpu_custom_call.1} parent=1 // pred_region
      _
    $region13: #{tpu_custom_call.1} parent=1 // pred_fallthru
      _
    // Predicated region
    $region14: #{tpu_custom_call.1} parent=1 // pred_check
      _
    $region15: #{tpu_custom_call.1} parent=1 // pred_check_branch
      %35 = sbr.rel (0) target = $region17
    $region16: #{tpu_custom_call.1} parent=1 // pred_region
      _
    $region17: #{tpu_custom_call.1} parent=1 // pred_fallthru
      _
    // Predicated region
    $region18: #{tpu_custom_call.1} parent=1 // pred_check
      _
    $region19: #{tpu_custom_call.1} parent=1 // pred_check_branch
      %37 = sbr.rel (0) target = $region21
    $region20: #{tpu_custom_call.1} parent=1 // pred_region
      _
    $region21: #{tpu_custom_call.1} parent=1 // pred_fallthru
      _
    // Predicated region
    $region22: #{tpu_custom_call.1} parent=1 // pred_check
      _
    $region23: #{tpu_custom_call.1} parent=1 // pred_check_branch
      %39 = sbr.rel (0) target = $region25
    $region24: #{tpu_custom_call.1} parent=1 // pred_region
      _
    $region25: #{tpu_custom_call.1} parent=1 // pred_fallthru
      _
    // Predicated region
    $region26: #{tpu_custom_call.1} parent=1 // pred_check
      _
    $region27: #{tpu_custom_call.1} parent=1 // pred_check_branch
      %41 = sbr.rel (0) target = $region29
    $region28: #{tpu_custom_call.1} parent=1 // pred_region
      _
    $region29: #{tpu_custom_call.1} parent=1 // pred_fallthru
      _
    // Predicated region
    $region30: #{tpu_custom_call.1} parent=1 // pred_check
      _
    $region31: #{tpu_custom_call.1} parent=1 // pred_check_branch
      %43 = sbr.rel (0) target = $region33
    $region32: #{tpu_custom_call.1} parent=1 // pred_region
      _
    $region33: #{tpu_custom_call.1} parent=1 // pred_fallthru
      _
    // Predicated region
    $region34: #{tpu_custom_call.1} parent=1 // pred_check
      _
    $region35: #{tpu_custom_call.1} parent=1 // pred_check_branch
      %45 = sbr.rel (0) target = $region37
    $region36: #{tpu_custom_call.1} parent=1 // pred_region
      _
    $region37: #{tpu_custom_call.1} parent=1 // pred_fallthru
      _
    // Predicated region
    $region38: #{tpu_custom_call.1} parent=1 // pred_check
      _
    $region39: #{tpu_custom_call.1} parent=1 // pred_check_branch
      %47 = sbr.rel (0) target = $region41
    $region40: #{tpu_custom_call.1} parent=1 // pred_region
      _
    $region41: #{tpu_custom_call.1} parent=1 // pred_fallthru
      _
    // Predicated region
    $region42: #{tpu_custom_call.1} parent=1 // pred_check
      _
    $region43: #{tpu_custom_call.1} parent=1 // pred_check_branch
      %49 = sbr.rel (0) target = $region45
    $region44: #{tpu_custom_call.1} parent=1 // pred_region
      _
    $region45: #{tpu_custom_call.1} parent=1 // pred_fallthru
      _
    // Predicated region
    $region46: #{tpu_custom_call.1} parent=1 // pred_check
      _
    $region47: #{tpu_custom_call.1} parent=1 // pred_check_branch
      %51 = sbr.rel (0) target = $region49
    $region48: #{tpu_custom_call.1} parent=1 // pred_region
      _
    $region49: #{tpu_custom_call.1} parent=1 // pred_fallthru
      _
    // Predicated region
    $region50: #{tpu_custom_call.1} parent=1 // pred_check
      _
    $region51: #{tpu_custom_call.1} parent=1 // pred_check_branch
      %53 = sbr.rel (0) target = $region53
    $region52: #{tpu_custom_call.1} parent=1 // pred_region
      _
    $region53: #{tpu_custom_call.1} parent=1 // pred_fallthru
      _
    // Predicated region
    $region54: #{tpu_custom_call.1} parent=1 // pred_check
      _
    $region55: #{tpu_custom_call.1} parent=1 // pred_check_branch
      %55 = sbr.rel (0) target = $region57
    $region56: #{tpu_custom_call.1} parent=1 // pred_region
      %56 = dma.done [#allocation3], 64
    $region57: #{tpu_custom_call.1} parent=1 // pred_fallthru
      _
    %v57 = vld [vmem:[#allocation2] sm:$0xf]
    %v58 = vld [vmem:[%s2] sm:$0xff]
    %vm59 = vcmask 31744
    %v61 = vsel %vm59, %v58, 0
    %vm63 = vcmask 1043456
    %v65 = vsel %vm63, %v57, 0
    %67 = vmatprep.subr.mxu0 0.0
    %68 = vmatpush1.msra.mxu0 %v65
    %69 = vmatprep.subr.mxu0 0.0
    %70 = vmatpush1.msra.mxu0 0.0
    %71 = vmatprep.subr.mxu0 0.0
    %72 = vmatpush1.msra.mxu0 0.0
    %73 = vmatprep.subr.mxu0 0.0
    %74 = vmatpush1.msra.mxu0 0.0
    %75 = vmatprep.subr.mxu0 0.0
    %76 = vmatpush1.msra.mxu0 0.0
    %77 = vmatprep.subr.mxu0 0.0
    %78 = vmatpush1.msra.mxu0 0.0
    %79 = vmatprep.subr.mxu0 0.0
    %80 = vmatpush1.msra.mxu0 0.0
    %81 = vmatprep.subr.mxu0 0.0
    %82 = vmatpush1.msra.mxu0 0.0
    %83 = vmatprep.subr.mxu0 0.0
    %84 = vmatpush1.msra.mxu0 0.0
    %85 = vmatprep.subr.mxu0 0.0
    %86 = vmatpush1.msra.mxu0 0.0
    %87 = vmatprep.subr.mxu0 0.0
    %88 = vmatpush1.msra.mxu0 0.0
    %89 = vmatprep.subr.mxu0 0.0
    %90 = vmatpush1.msra.mxu0 0.0
    %91 = vmatprep.subr.mxu0 0.0
    %92 = vmatpush1.msra.mxu0 0.0
    %93 = vmatprep.subr.mxu0 0.0
    %94 = vmatpush1.msra.mxu0 0.0
    %95 = vmatprep.subr.mxu0 0.0
    %96 = vmatpush1.msra.mxu0 0.0
    %97 = vmatprep.subr.mxu0 0.0
    %98 = vmatpush1.msra.mxu0 0.0
    %99 = vmatprep.subr.mxu0 0.0
    %100 = vmatpush1.msra.mxu0 0.0
    %101 = vmatprep.subr.mxu0 0.0
    %102 = vmatpush1.msra.mxu0 0.0
    %103 = vmatprep.subr.mxu0 0.0
    %104 = vmatpush1.msra.mxu0 0.0
    %105 = vmatprep.subr.mxu0 0.0
    %106 = vmatpush1.msra.mxu0 0.0
    %107 = vmatprep.subr.mxu0 0.0
    %108 = vmatpush1.msra.mxu0 0.0
    %109 = vmatprep.subr.mxu0 0.0
    %110 = vmatpush1.msra.mxu0 0.0
    %111 = vmatprep.subr.mxu0 0.0
    %112 = vmatpush1.msra.mxu0 0.0
    %113 = vmatprep.subr.mxu0 0.0
    %114 = vmatpush1.msra.mxu0 0.0
    %115 = vmatprep.subr.mxu0 0.0
    %116 = vmatpush1.msra.mxu0 0.0
    %117 = vmatprep.subr.mxu0 0.0
    %118 = vmatpush1.msra.mxu0 0.0
    %119 = vmatprep.subr.mxu0 0.0
    %120 = vmatpush1.msra.mxu0 0.0
    %121 = vmatprep.subr.mxu0 0.0
    %122 = vmatpush1.msra.mxu0 0.0
    %123 = vmatprep.subr.mxu0 0.0
    %124 = vmatpush1.msra.mxu0 0.0
    %125 = vmatprep.subr.mxu0 0.0
    %126 = vmatpush1.msra.mxu0 0.0
    %127 = vmatprep.subr.mxu0 0.0
    %128 = vmatpush1.msra.mxu0 0.0
    %129 = vmatprep.subr.mxu0 0.0
    %130 = vmatpush1.msra.mxu0 0.0
    %131 = vmatprep.mubr.f32.mxu0 0.0
    %132 = vmatmul.mubr.f32.gmra.mrb[0].mxu0 %v61
    %v133 = vpop.f32.mrb[0].mxu0
    %v134 = vadd.f32 0.0, %v133
    %v135 = vpop.f32.mrb[0].mxu0
    %136 = vdwg.mxu0
    %v137 = vld [vmem:[%s3] sm:$0xff]
    %v138 = vld [vmem:[%s4] sm:$0xff]
    %139 = vadd.xlane.f32.xlu0 %v134
    %v140 = vpop.xlane.xlu0 %139
    %v141 = vmul.f32 %v140, 0.0078125
    %v142 = vmul.f32 %v134, %v134
    %143 = vadd.xlane.f32.xlu0 %v142
    %v144 = vpop.xlane.xlu0 %143
    %v145 = vmul.f32 %v144, 0.0078125
    %v146 = vmul.f32 %v141, %v141
    %v147 = vsub.f32 %v145, %v146
    %v148 = vmax.f32 %v147, 0.0
    %v149 = vadd.f32 %v148, 1e-05
    %v150 = vrsqrt.pop %v149
    %v151 = vmul.f32 %v137, %v150
    %153 = vset.pattern.permute.xlu0 0
    %154 = vperm.xlu0 %153, %v151
    %v155 = vpop.permute.xlu0 %154
    %v157 = vmul.f32 %v134, %v155
    %v158 = vmul.f32 %v141, %v151
    %v159 = vsub.f32 %v138, %v158
    %161 = vset.pattern.permute.xlu0 0
    %162 = vperm.xlu0 %161, %v159
    %v163 = vpop.permute.xlu0 %162
    %v165 = vadd.f32 %v157, %v163
    %v166 = vmax.f32 %v165, 0.0
    %167 = vrot.lane.b32.xlu0 %v166, 9
    %v168 = vpop.permute.xlu0 %167
    %169 = vrot.lane.b32.xlu0 %v166, 8
    %v170 = vpop.permute.xlu0 %169
    %171 = vrot.lane.b32.xlu0 %v166, 7
    %v172 = vpop.permute.xlu0 %171
    %173 = vrot.lane.b32.xlu0 %v166, 1
    %v174 = vpop.permute.xlu0 %173
    %175 = vrot.lane.b32.xlu0 %v166, 127
    %v176 = vpop.permute.xlu0 %175
    %177 = vrot.lane.b32.xlu0 %v166, 121
    %v178 = vpop.permute.xlu0 %177
    %179 = vrot.lane.b32.xlu0 %v166, 120
    %v180 = vpop.permute.xlu0 %179
    %181 = vrot.lane.b32.xlu0 %v166, 119
    %v182 = vpop.permute.xlu0 %181
    %v183 = vld [vmem:[%s1] sm:$0xff]
    %v184 = vld [vmem:[%s1 + $0x8] sm:$0xff]
    %v185 = vld [vmem:[%s1 + $0x10] sm:$0xff]
    %v186 = vld [vmem:[%s1 + $0x18] sm:$0xff]
    %v187 = vld [vmem:[%s1 + $0x20] sm:$0xff]
    %v188 = vld [vmem:[%s1 + $0x28] sm:$0xff]
    %v189 = vld [vmem:[%s1 + $0x30] sm:$0xff]
    %v190 = vld [vmem:[%s1 + $0x38] sm:$0xff]
    %v191 = vld [vmem:[%s1 + $0x40] sm:$0xff]
    %v192 = vmul.f32 %v168, %v183
    %v193 = vmul.f32 %v170, %v184
    %v194 = vmul.f32 %v172, %v185
    %v195 = vmul.f32 %v174, %v186
    %v196 = vmul.f32 %v166, %v187
    %v197 = vmul.f32 %v176, %v188
    %v198 = vmul.f32 %v178, %v189
    %v199 = vmul.f32 %v180, %v190
    %v200 = vmul.f32 %v182, %v191
    %v201 = vld [vmem:[%s5] sm:$0xff]
    %vm202 = vcmask 588800
    %v204 = vsel %vm202, %v201, 0
    %206 = vmatprep.subr.mxu0 0.0
    %207 = vmatpush1.msra.mxu0 %v192
    %208 = vmatprep.subr.mxu0 0.0
    %209 = vmatpush1.msra.mxu0 %v193
    %210 = vmatprep.subr.mxu0 0.0
    %211 = vmatpush1.msra.mxu0 %v194
    %212 = vmatprep.subr.mxu0 0.0
    %213 = vmatpush1.msra.mxu0 %v195
    %214 = vmatprep.subr.mxu0 0.0
    %215 = vmatpush1.msra.mxu0 %v196
    %216 = vmatprep.subr.mxu0 0.0
    %217 = vmatpush1.msra.mxu0 %v197
    %218 = vmatprep.subr.mxu0 0.0
    %219 = vmatpush1.msra.mxu0 %v198
    %220 = vmatprep.subr.mxu0 0.0
    %221 = vmatpush1.msra.mxu0 %v199
    %222 = vmatprep.subr.mxu0 0.0
    %223 = vmatpush1.msra.mxu0 %v200
    %224 = vmatprep.subr.mxu0 0.0
    %225 = vmatpush1.msra.mxu0 0.0
    %226 = vmatprep.subr.mxu0 0.0
    %227 = vmatpush1.msra.mxu0 0.0
    %228 = vmatprep.subr.mxu0 0.0
    %229 = vmatpush1.msra.mxu0 0.0
    %230 = vmatprep.subr.mxu0 0.0
    %231 = vmatpush1.msra.mxu0 0.0
    %232 = vmatprep.subr.mxu0 0.0
    %233 = vmatpush1.msra.mxu0 0.0
    %234 = vmatprep.subr.mxu0 0.0
    %235 = vmatpush1.msra.mxu0 0.0
    %236 = vmatprep.subr.mxu0 0.0
    %237 = vmatpush1.msra.mxu0 0.0
    %238 = vmatprep.subr.mxu0 0.0
    %239 = vmatpush1.msra.mxu0 0.0
    %240 = vmatprep.subr.mxu0 0.0
    %241 = vmatpush1.msra.mxu0 0.0
    %242 = vmatprep.subr.mxu0 0.0
    %243 = vmatpush1.msra.mxu0 0.0
    %244 = vmatprep.subr.mxu0 0.0
    %245 = vmatpush1.msra.mxu0 0.0
    %246 = vmatprep.subr.mxu0 0.0
    %247 = vmatpush1.msra.mxu0 0.0
    %248 = vmatprep.subr.mxu0 0.0
    %249 = vmatpush1.msra.mxu0 0.0
    %250 = vmatprep.subr.mxu0 0.0
    %251 = vmatpush1.msra.mxu0 0.0
    %252 = vmatprep.subr.mxu0 0.0
    %253 = vmatpush1.msra.mxu0 0.0
    %254 = vmatprep.subr.mxu0 0.0
    %255 = vmatpush1.msra.mxu0 0.0
    %256 = vmatprep.subr.mxu0 0.0
    %257 = vmatpush1.msra.mxu0 0.0
    %258 = vmatprep.subr.mxu0 0.0
    %259 = vmatpush1.msra.mxu0 0.0
    %260 = vmatprep.subr.mxu0 0.0
    %261 = vmatpush1.msra.mxu0 0.0
    %262 = vmatprep.subr.mxu0 0.0
    %263 = vmatpush1.msra.mxu0 0.0
    %264 = vmatprep.subr.mxu0 0.0
    %265 = vmatpush1.msra.mxu0 0.0
    %266 = vmatprep.subr.mxu0 0.0
    %267 = vmatpush1.msra.mxu0 0.0
    %268 = vmatprep.subr.mxu0 0.0
    %269 = vmatpush1.msra.mxu0 0.0
    %270 = vmatprep.mubr.f32.mxu0 0.0
    %271 = vmatmul.mubr.f32.gmra.mrb[0].mxu0 %v204
    %v272 = vpop.f32.mrb[0].mxu0
    %v273 = vadd.f32 0.0, %v272
    %v274 = vpop.f32.mrb[0].mxu0
    %275 = vdwg.mxu0
    %v276 = vld [vmem:[%s6] sm:$0xff]
    %v277 = vld [vmem:[%s7] sm:$0xff]
    %278 = vadd.xlane.f32.xlu0 %v273
    %v279 = vpop.xlane.xlu0 %278
    %v280 = vmul.f32 %v279, 0.0078125
    %v281 = vmul.f32 %v273, %v273
    %282 = vadd.xlane.f32.xlu0 %v281
    %v283 = vpop.xlane.xlu0 %282
    %v284 = vmul.f32 %v283, 0.0078125
    %v285 = vmul.f32 %v280, %v280
    %v286 = vsub.f32 %v284, %v285
    %v287 = vmax.f32 %v286, 0.0
    %v288 = vadd.f32 %v287, 1e-05
    %v289 = vrsqrt.pop %v288
    %v290 = vmul.f32 %v276, %v289
    %292 = vset.pattern.permute.xlu0 0
    %293 = vperm.xlu0 %292, %v290
    %v294 = vpop.permute.xlu0 %293
    %v296 = vmul.f32 %v273, %v294
    %v297 = vmul.f32 %v280, %v290
    %v298 = vsub.f32 %v277, %v297
    %300 = vset.pattern.permute.xlu0 0
    %301 = vperm.xlu0 %300, %v298
    %v302 = vpop.permute.xlu0 %301
    %v304 = vadd.f32 %v296, %v302
    %v305 = vmax.f32 %v304, 0.0
    %v306 = vld [vmem:[%s8] sm:$0xff]
    %vm307 = vcmask 64512
    %v309 = vsel %vm307, %v306, 0
    %311 = vmatprep.subr.mxu0 0.0
    %312 = vmatpush1.msra.mxu0 %v305
    %313 = vmatprep.subr.mxu0 0.0
    %314 = vmatpush1.msra.mxu0 0.0
    %315 = vmatprep.subr.mxu0 0.0
    %316 = vmatpush1.msra.mxu0 0.0
    %317 = vmatprep.subr.mxu0 0.0
    %318 = vmatpush1.msra.mxu0 0.0
    %319 = vmatprep.subr.mxu0 0.0
    %320 = vmatpush1.msra.mxu0 0.0
    %321 = vmatprep.subr.mxu0 0.0
    %322 = vmatpush1.msra.mxu0 0.0
    %323 = vmatprep.subr.mxu0 0.0
    %324 = vmatpush1.msra.mxu0 0.0
    %325 = vmatprep.subr.mxu0 0.0
    %326 = vmatpush1.msra.mxu0 0.0
    %327 = vmatprep.subr.mxu0 0.0
    %328 = vmatpush1.msra.mxu0 0.0
    %329 = vmatprep.subr.mxu0 0.0
    %330 = vmatpush1.msra.mxu0 0.0
    %331 = vmatprep.subr.mxu0 0.0
    %332 = vmatpush1.msra.mxu0 0.0
    %333 = vmatprep.subr.mxu0 0.0
    %334 = vmatpush1.msra.mxu0 0.0
    %335 = vmatprep.subr.mxu0 0.0
    %336 = vmatpush1.msra.mxu0 0.0
    %337 = vmatprep.subr.mxu0 0.0
    %338 = vmatpush1.msra.mxu0 0.0
    %339 = vmatprep.subr.mxu0 0.0
    %340 = vmatpush1.msra.mxu0 0.0
    %341 = vmatprep.subr.mxu0 0.0
    %342 = vmatpush1.msra.mxu0 0.0
    %343 = vmatprep.subr.mxu0 0.0
    %344 = vmatpush1.msra.mxu0 0.0
    %345 = vmatprep.subr.mxu0 0.0
    %346 = vmatpush1.msra.mxu0 0.0
    %347 = vmatprep.subr.mxu0 0.0
    %348 = vmatpush1.msra.mxu0 0.0
    %349 = vmatprep.subr.mxu0 0.0
    %350 = vmatpush1.msra.mxu0 0.0
    %351 = vmatprep.subr.mxu0 0.0
    %352 = vmatpush1.msra.mxu0 0.0
    %353 = vmatprep.subr.mxu0 0.0
    %354 = vmatpush1.msra.mxu0 0.0
    %355 = vmatprep.subr.mxu0 0.0
    %356 = vmatpush1.msra.mxu0 0.0
    %357 = vmatprep.subr.mxu0 0.0
    %358 = vmatpush1.msra.mxu0 0.0
    %359 = vmatprep.subr.mxu0 0.0
    %360 = vmatpush1.msra.mxu0 0.0
    %361 = vmatprep.subr.mxu0 0.0
    %362 = vmatpush1.msra.mxu0 0.0
    %363 = vmatprep.subr.mxu0 0.0
    %364 = vmatpush1.msra.mxu0 0.0
    %365 = vmatprep.subr.mxu0 0.0
    %366 = vmatpush1.msra.mxu0 0.0
    %367 = vmatprep.subr.mxu0 0.0
    %368 = vmatpush1.msra.mxu0 0.0
    %369 = vmatprep.subr.mxu0 0.0
    %370 = vmatpush1.msra.mxu0 0.0
    %371 = vmatprep.subr.mxu0 0.0
    %372 = vmatpush1.msra.mxu0 0.0
    %373 = vmatprep.subr.mxu0 0.0
    %374 = vmatpush1.msra.mxu0 0.0
    %375 = vmatprep.mubr.f32.mxu0 0.0
    %376 = vmatmul.mubr.f32.gmra.mrb[0].mxu0 %v309
    %v377 = vpop.f32.mrb[0].mxu0
    %v378 = vadd.f32 0.0, %v377
    %v379 = vpop.f32.mrb[0].mxu0
    %380 = vdwg.mxu0
    %v381 = vld [vmem:[%s9] sm:$0xff]
    %v382 = vld [vmem:[%s10] sm:$0xff]
    %383 = vadd.xlane.f32.xlu0 %v378
    %v384 = vpop.xlane.xlu0 %383
    %v385 = vmul.f32 %v384, 0.0078125
    %v386 = vmul.f32 %v378, %v378
    %387 = vadd.xlane.f32.xlu0 %v386
    %v388 = vpop.xlane.xlu0 %387
    %v389 = vmul.f32 %v388, 0.0078125
    %v390 = vmul.f32 %v385, %v385
    %v391 = vsub.f32 %v389, %v390
    %v392 = vmax.f32 %v391, 0.0
    %v393 = vadd.f32 %v392, 1e-05
    %v394 = vrsqrt.pop %v393
    %v395 = vmul.f32 %v381, %v394
    %397 = vset.pattern.permute.xlu0 0
    %398 = vperm.xlu0 %397, %v395
    %v399 = vpop.permute.xlu0 %398
    %v401 = vmul.f32 %v378, %v399
    %v402 = vmul.f32 %v385, %v395
    %v403 = vsub.f32 %v382, %v402
    %405 = vset.pattern.permute.xlu0 0
    %406 = vperm.xlu0 %405, %v403
    %v407 = vpop.permute.xlu0 %406
    %v409 = vadd.f32 %v401, %v407
    %v410 = vld [vmem:[%s11] sm:$0xff]
    %v411 = vld [vmem:[%s12] sm:$0xff]
    %413 = vset.pattern.permute.xlu0 0
    %414 = vperm.xlu0 %413, %v411
    %v415 = vpop.permute.xlu0 %414
    %v418 = vsel %vm59, %v410, 0
    %420 = vmatprep.subr.mxu0 0.0
    %421 = vmatpush1.msra.mxu0 %v65
    %422 = vmatprep.subr.mxu0 0.0
    %423 = vmatpush1.msra.mxu0 0.0
    %424 = vmatprep.subr.mxu0 0.0
    %425 = vmatpush1.msra.mxu0 0.0
    %426 = vmatprep.subr.mxu0 0.0
    %427 = vmatpush1.msra.mxu0 0.0
    %428 = vmatprep.subr.mxu0 0.0
    %429 = vmatpush1.msra.mxu0 0.0
    %430 = vmatprep.subr.mxu0 0.0
    %431 = vmatpush1.msra.mxu0 0.0
    %432 = vmatprep.subr.mxu0 0.0
    %433 = vmatpush1.msra.mxu0 0.0
    %434 = vmatprep.subr.mxu0 0.0
    %435 = vmatpush1.msra.mxu0 0.0
    %436 = vmatprep.subr.mxu0 0.0
    %437 = vmatpush1.msra.mxu0 0.0
    %438 = vmatprep.subr.mxu0 0.0
    %439 = vmatpush1.msra.mxu0 0.0
    %440 = vmatprep.subr.mxu0 0.0
    %441 = vmatpush1.msra.mxu0 0.0
    %442 = vmatprep.subr.mxu0 0.0
    %443 = vmatpush1.msra.mxu0 0.0
    %444 = vmatprep.subr.mxu0 0.0
    %445 = vmatpush1.msra.mxu0 0.0
    %446 = vmatprep.subr.mxu0 0.0
    %447 = vmatpush1.msra.mxu0 0.0
    %448 = vmatprep.subr.mxu0 0.0
    %449 = vmatpush1.msra.mxu0 0.0
    %450 = vmatprep.subr.mxu0 0.0
    %451 = vmatpush1.msra.mxu0 0.0
    %452 = vmatprep.subr.mxu0 0.0
    %453 = vmatpush1.msra.mxu0 0.0
    %454 = vmatprep.subr.mxu0 0.0
    %455 = vmatpush1.msra.mxu0 0.0
    %456 = vmatprep.subr.mxu0 0.0
    %457 = vmatpush1.msra.mxu0 0.0
    %458 = vmatprep.subr.mxu0 0.0
    %459 = vmatpush1.msra.mxu0 0.0
    %460 = vmatprep.subr.mxu0 0.0
    %461 = vmatpush1.msra.mxu0 0.0
    %462 = vmatprep.subr.mxu0 0.0
    %463 = vmatpush1.msra.mxu0 0.0
    %464 = vmatprep.subr.mxu0 0.0
    %465 = vmatpush1.msra.mxu0 0.0
    %466 = vmatprep.subr.mxu0 0.0
    %467 = vmatpush1.msra.mxu0 0.0
    %468 = vmatprep.subr.mxu0 0.0
    %469 = vmatpush1.msra.mxu0 0.0
    %470 = vmatprep.subr.mxu0 0.0
    %471 = vmatpush1.msra.mxu0 0.0
    %472 = vmatprep.subr.mxu0 0.0
    %473 = vmatpush1.msra.mxu0 0.0
    %474 = vmatprep.subr.mxu0 0.0
    %475 = vmatpush1.msra.mxu0 0.0
    %476 = vmatprep.subr.mxu0 0.0
    %477 = vmatpush1.msra.mxu0 0.0
    %478 = vmatprep.subr.mxu0 0.0
    %479 = vmatpush1.msra.mxu0 0.0
    %480 = vmatprep.subr.mxu0 0.0
    %481 = vmatpush1.msra.mxu0 0.0
    %482 = vmatprep.subr.mxu0 0.0
    %483 = vmatpush1.msra.mxu0 0.0
    %484 = vmatprep.mubr.f32.mxu0 0.0
    %485 = vmatmul.mubr.f32.gmra.mrb[0].mxu0 %v418
    %v486 = vpop.f32.mrb[0].mxu0
    %v487 = vadd.f32 %v415, %v486
    %v488 = vpop.f32.mrb[0].mxu0
    %489 = vdwg.mxu0
    %v490 = vadd.f32 %v409, %v487
    %v491 = vmax.f32 %v490, 0.0
    %492 = vst [vmem:[#allocation5] sm:$0xff] %v491
    // Predicated region
    $region58: #{tpu_custom_call.1} parent=1 // pred_check
      _
    $region59: #{tpu_custom_call.1} parent=1 // pred_check_branch
      %494 = sbr.rel (0) target = $region61
    $region60: #{tpu_custom_call.1} parent=1 // pred_region
      %s496 = ssub.s32 128, 128
      %497 = vsyncadd [#allocation4], %s496
      %s499 = sshll.u32 [#allocation5], 4
      %s500 = int_to_ptr.vmem [resolvable:$true] %s499
      %502 = dma.vmem_to_hbm [thread:$0]  %s500, 128, %s13, [#allocation4]
    $region61: #{tpu_custom_call.1} parent=1 // pred_fallthru
      _
    // Predicated region
    $region62: #{tpu_custom_call.1} parent=1 // pred_check
      _
    $region63: #{tpu_custom_call.1} parent=1 // pred_check_branch
      %504 = sbr.rel (0) target = $region65
    $region64: #{tpu_custom_call.1} parent=1 // pred_region
      %505 = dma.done [#allocation4], 128
    $region65: #{tpu_custom_call.1} parent=1 // pred_fallthru
      _
    %506 = vsyncpa [#allocation3], 1
    %507 = vsyncpa [#allocation4], 1

</llo_original>
